<compile_context>
chip_gen: v5e
topology: v5e:2x2
jax: 0.10.0
libtpu: 0.0.40
codegen_flags: <defaults>
</compile_context>

<pallas_src>
import jax
import jax.numpy as jnp
from jax import lax
from jax.experimental import pallas as pl
from jax.experimental.pallas import tpu as pltpu


_LANES = 128                      # lane width of the streaming slab
_SUB_ROWS = 32                    # rows per inner-loop chunk (4 vregs / operand)
_BLOCK_BYTES = 4 * 1024 * 1024    # per-input HBM->VMEM block target


def _cdiv(a: int, b: int) -> int:
    return -(-a // b)


def _round_up(a: int, b: int) -> int:
    return _cdiv(a, b) * b


def _num_parallel_chunks() -> int:
    """2 independent chunks on chips with two TensorCores behind one device."""
    try:
        kind = jax.devices()[0].device_kind.lower()
    except Exception:
        return 1
    return 2 if any(t in kind for t in ("v7", "v5p", "v4")) else 1


def _make_rmsle_kernel(valid_rows, tile_r, sub_r, steps, lanes, needs_mask):
    """Kernel over grid (n_par, steps); accumulates sum((log1p(p)-log1p(t))^2).

    Each grid step streams one (tile_r, lanes) block of both inputs and folds
    its contribution into the chunk's (8, lanes) output block (VMEM-resident
    across the 'arbitrary' axis). Partial / ghost blocks are masked by row.
    """
    n_sub = tile_r // sub_r

    def kernel(pred_ref, true_ref, out_ref):
        s = pl.program_id(1)

        @pl.when(s == 0)
        def _():
            out_ref[...] = jnp.zeros_like(out_ref)

        if needs_mask:
            # Logical (unclamped) row offset of this step in the (R, 128) slab;
            # ghost steps (clamped index_map) land past the end -> fully masked.
            block_row0 = (pl.program_id(0) * steps + s) * tile_r
            rows_left0 = valid_rows - block_row0            # scalar int32
            row_iota = lax.broadcasted_iota(jnp.int32, (sub_r, lanes), 0)

        def body(k, acc):
            base = pl.multiple_of(k * sub_r, sub_r)
            pc = pred_ref[pl.ds(base, sub_r), :].astype(jnp.float32)
            tc = true_ref[pl.ds(base, sub_r), :].astype(jnp.float32)
            d = jnp.log1p(pc) - jnp.log1p(tc)               # EUP + VPU
            sq = d * d
            if needs_mask:
                # Zero out garbage rows of Pallas partial/ghost blocks.
                sq = jnp.where(row_iota < (rows_left0 - base), sq, 0.0)
            return acc + sq

        acc = lax.fori_loop(0, n_sub, body,
                            jnp.zeros((sub_r, lanes), jnp.float32))

        # Fold (sub_r, 128) -> (8, 128): whole-vreg VALU adds only (no XLU),
        # then accumulate into the resident output block.
        out_ref[...] += acc.reshape(sub_r // 8, 8, lanes).sum(axis=0)

    return kernel


def rmsle_loss(y_pred: jax.Array, y_true: jax.Array, *,
               block_bytes: int = _BLOCK_BYTES) -> jax.Array:
    """RMSLE loss. Accepts (n_nodes,) or (n_nodes, n_samples) arrays."""
    assert y_pred.shape == y_true.shape, "Shape mismatch."
    n = int(y_pred.size)
    assert n > 0, "Empty input."

    pred = y_pred.reshape(-1)
    true = y_true.reshape(-1)

    # Lane-dense (R, 128) view. When n % 128 == 0 (any 2-D input whose sample
    # dim is a multiple of 128, and most large inputs) this is a free reshape
    # of the contiguous buffer — no jnp.pad, no extra HBM traffic.
    if n % _LANES:
        # TODO(synk): ragged sizes still pay one pad copy (adds <=127 zeros but
        # materializes both arrays); a fully pad-free path would need manual
        # DMA of the tail. Padded zeros contribute 0 (log1p(0) == 0).
        pad = _LANES - n % _LANES
        pred = jnp.pad(pred, (0, pad))
        true = jnp.pad(true, (0, pad))
    R = pred.size // _LANES
    pred2 = pred.reshape(R, _LANES)
    true2 = true.reshape(R, _LANES)
    itemsize = pred2.dtype.itemsize

    # Row tiling: big streaming blocks (~block_bytes per input per grid step).
    if R <= _SUB_ROWS:
        tile_r = _round_up(R, 8)
        sub_r = tile_r
    else:
        max_rows = max(_SUB_ROWS,
                       (block_bytes // (_LANES * itemsize)) // _SUB_ROWS * _SUB_ROWS)
        tile_r = min(max_rows, _round_up(R, _SUB_ROWS))
        sub_r = _SUB_ROWS

    row_tiles = _cdiv(R, tile_r)
    n_par = _num_parallel_chunks() if row_tiles >= 2 else 1   # 1 on v5e/v6e
    steps = _cdiv(row_tiles, n_par)
    last_tile = row_tiles - 1
    # Mask only when the last block is partial or a ghost step exists.
    needs_mask = (R % tile_r != 0) or (n_par * steps != row_tiles)

    def in_index_map(p, s):
        # Clamp ghost steps onto the last real tile; the kernel masks them to 0.
        return (jnp.minimum(p * steps + s, last_tile), 0)

    in_spec = pl.BlockSpec((tile_r, _LANES), in_index_map)
    kernel = _make_rmsle_kernel(R, tile_r, sub_r, steps, _LANES, needs_mask)

    partials = pl.pallas_call(
        kernel,
        out_shape=jax.ShapeDtypeStruct((n_par * 8, _LANES), jnp.float32),
        grid_spec=pltpu.PrefetchScalarGridSpec(
            num_scalar_prefetch=0,
            grid=(n_par, steps),
            in_specs=[in_spec, in_spec],
            out_specs=pl.BlockSpec((8, _LANES), lambda p, s: (p, 0)),
        ),
        compiler_params=pltpu.CompilerParams(
            dimension_semantics=("parallel", "arbitrary"),
            vmem_limit_bytes=32 * 1024 * 1024,
        ),
        cost_estimate=pl.CostEstimate(
            flops=3 * n,
            transcendentals=2 * n,
            bytes_accessed=2 * R * _LANES * itemsize + n_par * 8 * _LANES * 4,
        ),
    )(pred2, true2)

    # Final mean (over the TRUE element count) + sqrt in the wrapper.
    return jnp.sqrt(jnp.sum(partials) / n)


if __name__ == "__main__":
    key = jax.random.PRNGKey(0)
    k1, k2 = jax.random.split(key)

    # (n_nodes, n_samples) 2-D path — lane-aligned, zero-copy, no masking.
    n_nodes, n_samples = 16, 128
    y_pred = jax.random.uniform(k1, (n_nodes, n_samples), jnp.float32) * 10.0
    y_true = jax.random.uniform(k2, (n_nodes, n_samples), jnp.float32) * 10.0
    loss = rmsle_loss(y_pred, y_true)
    jax.block_until_ready(loss)
    ref = jnp.sqrt(jnp.mean((jnp.log1p(y_pred) - jnp.log1p(y_true)) ** 2))
    assert jnp.allclose(loss, ref, rtol=1e-5, atol=1e-6), (loss, ref)

    # 1-D (n_nodes,) path with a ragged length (exercises the tail mask).
    yp1 = jax.random.uniform(k1, (37,), jnp.float32) * 5.0
    yt1 = jax.random.uniform(k2, (37,), jnp.float32) * 5.0
    loss1 = rmsle_loss(yp1, yt1)
    jax.block_until_ready(loss1)
    ref1 = jnp.sqrt(jnp.mean((jnp.log1p(yp1) - jnp.log1p(yt1)) ** 2))
    assert jnp.allclose(loss1, ref1, rtol=1e-5, atol=1e-6), (loss1, ref1)

    # Multi-tile path (several grid steps, partial last block, per-device
    # parallel chunks) at a small size by shrinking the per-block byte target.
    yp2 = jax.random.uniform(k1, (300, 128), jnp.float32) * 3.0
    yt2 = jax.random.uniform(k2, (300, 128), jnp.float32) * 3.0
    loss2 = rmsle_loss(yp2, yt2, block_bytes=64 * 1024)
    jax.block_until_ready(loss2)
    ref2 = jnp.sqrt(jnp.mean((jnp.log1p(yp2) - jnp.log1p(yt2)) ** 2))
    assert jnp.allclose(loss2, ref2, rtol=1e-5, atol=1e-6), (loss2, ref2)

    print("KERNEL_OK")
</pallas_src>

<mosaic_0001>
module attributes {stable_mosaic.version = 11 : i64} {
  func.func @kernel(%arg0: i32, %arg1: i32, %arg2: memref<16x128xf32, #tpu.memory_space<vmem>>, %arg3: memref<16x128xf32, #tpu.memory_space<vmem>>, %arg4: memref<8x128xf32, #tpu.memory_space<vmem>>) attributes {dimension_semantics = [#tpu.dimension_semantics<parallel>, #tpu.dimension_semantics<arbitrary>], iteration_bounds = array<i64: 1, 1>, scalar_prefetch = 0 : i64, scratch_operands = 0 : i64, tpu.core_type = #tpu.core_type<tc>, window_params = [{transform_indices = @transform_0, window_bounds = array<i64: 16, 128>}, {transform_indices = @transform_1, window_bounds = array<i64: 16, 128>}, {transform_indices = @transform_2, window_bounds = array<i64: 8, 128>}]} {
    %c0_i32 = arith.constant 0 : i32
    %0 = arith.cmpi eq, %arg1, %c0_i32 : i32
    %1 = arith.extui %0 : i1 to i32
    %c0_i32_0 = arith.constant 0 : i32
    %2 = arith.cmpi ne, %1, %c0_i32_0 : i32
    scf.if %2 {
      %cst_8 = arith.constant 0.000000e+00 : f32
      %20 = vector.broadcast %cst_8 : f32 to vector<8x128xf32>
      %c0_9 = arith.constant 0 : index
      %c0_10 = arith.constant 0 : index
      %21 = vector.load %arg4[%c0_9, %c0_10] : memref<8x128xf32, #tpu.memory_space<vmem>>, vector<8x128xf32>
      tpu.vector_store %arg4[%c0_9, %c0_10], %20 {strides = array<i32>} : memref<8x128xf32, #tpu.memory_space<vmem>>, vector<8x128xf32>,
    } else {
    }
    %cst = arith.constant 0.000000e+00 : f32
    %3 = vector.broadcast %cst : f32 to vector<16x128xf32>
    %c0_i32_1 = arith.constant 0 : i32
    %c16_i32 = arith.constant 16 : i32
    %4 = arith.muli %c0_i32_1, %c16_i32 : i32
    %5 = tpu.assume_multiple %4, 16 : i32
    %6 = arith.index_cast %5 : i32 to index
    %c0 = arith.constant 0 : index
    %7 = vector.load %arg2[%6, %c0] : memref<16x128xf32, #tpu.memory_space<vmem>>, vector<16x128xf32>
    %8 = arith.index_cast %5 : i32 to index
    %c0_2 = arith.constant 0 : index
    %9 = vector.load %arg3[%8, %c0_2] : memref<16x128xf32, #tpu.memory_space<vmem>>, vector<16x128xf32>
    %10 = math.log1p %7 : vector<16x128xf32>
    %11 = math.log1p %9 : vector<16x128xf32>
    %12 = arith.subf %10, %11 : vector<16x128xf32>
    %13 = arith.mulf %12, %12 : vector<16x128xf32>
    %14 = arith.addf %3, %13 : vector<16x128xf32>
    %c1_i32 = arith.constant 1 : i32
    %c0_3 = arith.constant 0 : index
    %c0_4 = arith.constant 0 : index
    %15 = vector.load %arg4[%c0_3, %c0_4] : memref<8x128xf32, #tpu.memory_space<vmem>>, vector<8x128xf32>
    %16 = vector.shape_cast %14 : vector<16x128xf32> to vector<2x8x128xf32>
    %cst_5 = arith.constant dense<0.000000e+00> : vector<8x128xf32>
    %17 = vector.multi_reduction <add>, %16, %cst_5 [0] : vector<2x8x128xf32> to vector<8x128xf32>
    %18 = arith.addf %15, %17 : vector<8x128xf32>
    %c0_6 = arith.constant 0 : index
    %c0_7 = arith.constant 0 : index
    %19 = vector.load %arg4[%c0_6, %c0_7] : memref<8x128xf32, #tpu.memory_space<vmem>>, vector<8x128xf32>
    tpu.vector_store %arg4[%c0_6, %c0_7], %18 {strides = array<i32>} : memref<8x128xf32, #tpu.memory_space<vmem>>, vector<8x128xf32>,
    return
  }
  func.func @transform_0(%arg0: i32, %arg1: i32) -> (i32, i32) {
    %c1_i32 = arith.constant 1 : i32
    %0 = arith.muli %arg0, %c1_i32 : i32
    %1 = arith.addi %0, %arg1 : i32
    %c0_i32 = arith.constant 0 : i32
    %2 = arith.minsi %1, %c0_i32 : i32
    %c0_i32_0 = arith.constant 0 : i32
    %c0_i32_1 = arith.constant 0 : i32
    return %2, %c0_i32_0 : i32, i32
  }
  func.func @transform_1(%arg0: i32, %arg1: i32) -> (i32, i32) {
    %c1_i32 = arith.constant 1 : i32
    %0 = arith.muli %arg0, %c1_i32 : i32
    %1 = arith.addi %0, %arg1 : i32
    %c0_i32 = arith.constant 0 : i32
    %2 = arith.minsi %1, %c0_i32 : i32
    %c0_i32_0 = arith.constant 0 : i32
    %c0_i32_1 = arith.constant 0 : i32
    return %2, %c0_i32_0 : i32, i32
  }
  func.func @transform_2(%arg0: i32, %arg1: i32) -> (i32, i32) {
    %c0_i32 = arith.constant 0 : i32
    %c0_i32_0 = arith.constant 0 : i32
    return %arg0, %c0_i32 : i32, i32
  }
}

</mosaic_0001>

<llo_original>
// kernel: tpu_custom_call.1
$region0: #{tpu_custom_call.1}
  #allocation0 [shape = 'u32[]', space=smem, size = 0x4, offset = 0x4, fixed_abs, tag = 'smem constant byte address 0x4 - core index']
  #allocation1 [shape = 'u32[72,128]{1,0:T(1,128)}', space=vmem, size = 0x9000, scoped, tag = 'internal scratch']
  %s0 = inlined_call_operand.hbm [shape: f32[16,128], index: 0, kind: input, shape index: {}]
  %s1 = inlined_call_operand.hbm [shape: f32[16,128], index: 1, kind: input, shape index: {}]
  %s2 = inlined_call_operand.hbm [shape: f32[8,128], index: 2, kind: output, shape index: {}]
  %s3 = sld [smem:[#allocation0]]
  $region30: #{tpu_custom_call.1} parent=0
    _
  %s5 = ssub.s32 1, %s3
  %s6 = scalar_select 0, %s5, %s3
  $region1: #{tpu_custom_call.1} parent=0
    #allocation2 [shape = 'u8[8192]{0}', space=vmem, size = 0x2000, scoped, tag = 'input window, operand 0, single buffered']
    #allocation3 [shape = 's32[1]{0}', space=sflag, size = 0x4, scoped, tag = 'scoped memory for tpu_custom_call.1']
    #allocation4 [shape = 's32[1]{0}', space=sflag, size = 0x4, scoped, tag = 'scoped memory for tpu_custom_call.1']
    #allocation5 [shape = 'u8[8192]{0}', space=vmem, size = 0x2000, scoped, tag = 'input window, operand 1, single buffered']
    #allocation6 [shape = 's32[1]{0}', space=sflag, size = 0x4, scoped, tag = 'scoped memory for tpu_custom_call.1']
    #allocation7 [shape = 'u8[4096]{0}', space=vmem, size = 0x1000, scoped, tag = 'output window, operand 0, single buffered']
    %7 = vsyncpa [#allocation3], 0
    %8 = vsyncpa [#allocation6], 0
    %9 = vsyncpa [#allocation4], 0
    // Predicated region
    $region2: #{tpu_custom_call.1} parent=1 // pred_check
      _
    $region3: #{tpu_custom_call.1} parent=1 // pred_check_branch
      %11 = sbr.rel (0) target = $region5
    $region4: #{tpu_custom_call.1} parent=1 // pred_region
      %s12 = sadd.s32 0, 0
      %p13 = scmp.lt.s32.totalorder %s12, 0
      %s14 = scalar_select %p13, %s12, 0
      %s15 = smul.u32 2, %s14
      %17 = vsyncadd [#allocation3], 0
      %s18 = smul.addr %s15, 8
      %s19 = scalar_lea.hbm %s0, %s18
      %s20 = sshll.u32 %s19, 4
      %s21 = int_to_ptr.hbm [resolvable:$true] %s20
      %s22 = sshll.u32 [#allocation2], 4
      %s23 = int_to_ptr.vmem [resolvable:$true] %s22
      %28 = dma.hbm_to_vmem [thread:$0]  %s21, 256, %s23, [#allocation3], 128, 128, 8
    $region5: #{tpu_custom_call.1} parent=1 // pred_fallthru
      _
    // Predicated region
    $region6: #{tpu_custom_call.1} parent=1 // pred_check
      _
    $region7: #{tpu_custom_call.1} parent=1 // pred_check_branch
      %30 = sbr.rel (0) target = $region9
    $region8: #{tpu_custom_call.1} parent=1 // pred_region
      %s31 = sadd.s32 0, 0
      %p32 = scmp.lt.s32.totalorder %s31, 0
      %s33 = scalar_select %p32, %s31, 0
      %s34 = smul.u32 2, %s33
      %36 = vsyncadd [#allocation6], 0
      %s37 = smul.addr %s34, 8
      %s38 = scalar_lea.hbm %s1, %s37
      %s39 = sshll.u32 %s38, 4
      %s40 = int_to_ptr.hbm [resolvable:$true] %s39
      %s41 = sshll.u32 [#allocation5], 4
      %s42 = int_to_ptr.vmem [resolvable:$true] %s41
      %47 = dma.hbm_to_vmem [thread:$0]  %s40, 256, %s42, [#allocation6], 128, 128, 8
    $region9: #{tpu_custom_call.1} parent=1 // pred_fallthru
      _
    // Predicated region
    $region10: #{tpu_custom_call.1} parent=1 // pred_check
      _
    $region11: #{tpu_custom_call.1} parent=1 // pred_check_branch
      %49 = sbr.rel (0) target = $region13
    $region12: #{tpu_custom_call.1} parent=1 // pred_region
      %51 = dma.done [#allocation3], 256
    $region13: #{tpu_custom_call.1} parent=1 // pred_fallthru
      _
    // Predicated region
    $region14: #{tpu_custom_call.1} parent=1 // pred_check
      _
    $region15: #{tpu_custom_call.1} parent=1 // pred_check_branch
      %53 = sbr.rel (0) target = $region17
    $region16: #{tpu_custom_call.1} parent=1 // pred_region
      %55 = dma.done [#allocation6], 256
    $region17: #{tpu_custom_call.1} parent=1 // pred_fallthru
      _
    %s56 = sadd.s32 0, 0
    %p57 = scmp.lt.s32.totalorder %s56, 0
    %s58 = scalar_select %p57, %s56, 0
    %s59 = smul.u32 2, %s58
    %s60 = sadd.s32 0, 0
    %p61 = scmp.lt.s32.totalorder %s60, 0
    %s62 = scalar_select %p61, %s60, 0
    %s63 = smul.u32 2, %s62
    %p64 = scmp.eq.s32.totalorder 0, 0
    // Predicated region
    $region18: #{tpu_custom_call.1} parent=1 // pred_check
      %p65 = pneg %p64
    $region19: #{tpu_custom_call.1} parent=1 // pred_check_branch
      %67 = sbr.rel (%p65) target = $region21
    $region20: #{tpu_custom_call.1} parent=1 // pred_region
      %68 = vst [vmem:[#allocation7] sm:$0xff] 0.0
    $region21: #{tpu_custom_call.1} parent=1 // pred_fallthru
      _
    %v69 = vld [vmem:[#allocation2] sm:$0xff]
    %v70 = vld [vmem:[#allocation2 + $0x8] sm:$0xff]
    %v71 = vld [vmem:[#allocation5] sm:$0xff]
    %v72 = vld [vmem:[#allocation5 + $0x8] sm:$0xff]
    %v73 = vadd.f32 %v69, 1.0
    %v74 = vlog2.pop %v73
    %v75 = vmul.f32 %v74, 0.6931472
    %v76 = vmul.f32 -0.5, %v69
    %v77 = vadd.f32 %v76, 1.0
    %v78 = vmul.f32 %v77, %v69
    %v79 = vand.u32 2147483647, %v69
    %vm80 = vcmp.lt.f32.partialorder %v79, 0.0004427343
    %v81 = vsel %vm80, %v78, %v75
    %v82 = vadd.f32 %v70, 1.0
    %v83 = vlog2.pop %v82
    %v84 = vmul.f32 %v83, 0.6931472
    %v85 = vmul.f32 -0.5, %v70
    %v86 = vadd.f32 %v85, 1.0
    %v87 = vmul.f32 %v86, %v70
    %v88 = vand.u32 2147483647, %v70
    %vm89 = vcmp.lt.f32.partialorder %v88, 0.0004427343
    %v90 = vsel %vm89, %v87, %v84
    %v91 = vadd.f32 %v71, 1.0
    %v92 = vlog2.pop %v91
    %v93 = vmul.f32 %v92, 0.6931472
    %v94 = vmul.f32 -0.5, %v71
    %v95 = vadd.f32 %v94, 1.0
    %v96 = vmul.f32 %v95, %v71
    %v97 = vand.u32 2147483647, %v71
    %vm98 = vcmp.lt.f32.partialorder %v97, 0.0004427343
    %v99 = vsel %vm98, %v96, %v93
    %v100 = vadd.f32 %v72, 1.0
    %v101 = vlog2.pop %v100
    %v102 = vmul.f32 %v101, 0.6931472
    %v103 = vmul.f32 -0.5, %v72
    %v104 = vadd.f32 %v103, 1.0
    %v105 = vmul.f32 %v104, %v72
    %v106 = vand.u32 2147483647, %v72
    %vm107 = vcmp.lt.f32.partialorder %v106, 0.0004427343
    %v108 = vsel %vm107, %v105, %v102
    %v109 = vsub.f32 %v81, %v99
    %v110 = vsub.f32 %v90, %v108
    %v111 = vmul.f32 %v109, %v109
    %v112 = vmul.f32 %v110, %v110
    %v113 = vadd.f32 %v111, 0.0
    %v114 = vadd.f32 %v112, 0.0
    %v115 = vld [vmem:[#allocation7] sm:$0xff]
    %v116 = vadd.f32 %v113, %v114
    %v117 = vadd.f32 %v115, %v116
    %118 = vst [vmem:[#allocation7] sm:$0xff] %v117
    // Predicated region
    $region22: #{tpu_custom_call.1} parent=1 // pred_check
      _
    $region23: #{tpu_custom_call.1} parent=1 // pred_check_branch
      %120 = sbr.rel (0) target = $region25
    $region24: #{tpu_custom_call.1} parent=1 // pred_region
      %122 = vsyncadd [#allocation4], 0
      %s124 = sshll.u32 [#allocation7], 4
      %s125 = int_to_ptr.vmem [resolvable:$true] %s124
      %s126 = sshll.u32 %s2, 4
      %s127 = int_to_ptr.hbm [resolvable:$true] %s126
      %129 = dma.vmem_to_hbm [thread:$0]  %s125, 128, %s127, [#allocation4]
    $region25: #{tpu_custom_call.1} parent=1 // pred_fallthru
      _
    // Predicated region
    $region26: #{tpu_custom_call.1} parent=1 // pred_check
      _
    $region27: #{tpu_custom_call.1} parent=1 // pred_check_branch
      %131 = sbr.rel (0) target = $region29
    $region28: #{tpu_custom_call.1} parent=1 // pred_region
      %133 = dma.done [#allocation4], 128
    $region29: #{tpu_custom_call.1} parent=1 // pred_fallthru
      _
    %134 = vsyncpa [#allocation3], 1
    %135 = vsyncpa [#allocation6], 1
    %136 = vsyncpa [#allocation4], 1

</llo_original>
